<compile_context>
chip_gen: v7x
topology: tpu7x:2x2x1
jax: 0.10.0
libtpu: 0.0.40
codegen_flags: <defaults>
</compile_context>

<pallas_src>
import functools

import jax
import jax.numpy as jnp
from jax import lax
from jax.experimental import pallas as pl
from jax.experimental.pallas import tpu as pltpu

_LANE = 128


def _round_up(v, m):
    return ((v + m - 1) // m) * m


def _chip_defaults():
    """Return (num_splits, per-input block bytes) for the attached TPU generation."""
    try:
        kind = jax.devices()[0].device_kind.lower()
    except Exception:
        return 2, 4 << 20
    single_tc = ("lite" in kind) or ("v5e" in kind) or ("v6" in kind)
    is_v7 = ("v7" in kind) or ("7x" in kind)
    num_splits = 1 if single_tc else 2                 # megacore split only with 2 TCs
    block_bytes = (8 << 20) if is_v7 else (4 << 20)    # bigger steps on v7x's 3.2 TB/s HBM
    return num_splits, block_bytes


def _charbonnier_kernel(x_ref, y_ref, o_ref, *, eps, blocks_per_split,
                        full_rows, rem, ragged):
    c = pl.program_id(0)   # parallel split (megacore)
    i = pl.program_id(1)   # reduction step

    @pl.when(i == 0)
    def _():
        o_ref[...] = jnp.zeros_like(o_ref)

    x = x_ref[...].astype(jnp.float32)
    y = y_ref[...].astype(jnp.float32)
    diff = x - y
    err = jnp.sqrt(diff * diff + jnp.float32(eps))

    block_rows = x_ref.shape[0]
    acc_rows = o_ref.shape[0]

    def accumulate(e):
        # Fold the block into acc_rows-wide independent VALU chains (resident in
        # the output block); the single cross-lane reduce is done in the wrapper.
        o_ref[...] += e.reshape(-1, acc_rows, _LANE).sum(axis=0)

    if not ragged:
        accumulate(err)
    else:
        # Nominal (unclamped) row offset of this block in the flattened input.
        row_off = (c * blocks_per_split + i) * block_rows
        needs_mask = row_off + block_rows > full_rows

        @pl.when(jnp.logical_not(needs_mask))
        def _():
            accumulate(err)

        @pl.when(needs_mask)
        def _():
            row_ids = row_off + lax.broadcasted_iota(jnp.int32, err.shape, 0)
            valid = row_ids < full_rows
            if rem:
                lane_ids = lax.broadcasted_iota(jnp.int32, err.shape, 1)
                valid = valid | ((row_ids == full_rows) & (lane_ids < rem))
            accumulate(jnp.where(valid, err, jnp.float32(0.0)))


def l1_charbonnier_loss(x, y, *, eps=1e-6, block_bytes=None, num_splits=None):
    """Pallas implementation of L1_Charbonnier_loss.forward(X, Y) (sum reduction)."""
    assert x.shape == y.shape, "X and Y must have the same shape"
    eps = float(eps)  # static Python constant

    n = int(x.size)
    if n == 0:
        return jnp.zeros((), jnp.float32)

    auto_splits, auto_bytes = _chip_defaults()
    if num_splits is None:
        num_splits = auto_splits
    if block_bytes is None:
        block_bytes = auto_bytes

    itemsize = max(jnp.dtype(x.dtype).itemsize, jnp.dtype(y.dtype).itemsize)
    sub = max(8, 32 // itemsize)   # sublane packing: f32 -> 8, bf16 -> 16, int8/fp8 -> 32

    full_rows, rem = divmod(n, _LANE)
    rows = full_rows + (1 if rem else 0)

    xf = x.reshape(-1)
    yf = y.reshape(-1)
    if rem:
        # TODO(synk): non-128-aligned sizes take one small pad-to-128 copy; the
        # in-kernel mask makes the pad values irrelevant (no sqrt(eps) fixup).
        pad = _LANE - rem
        xf = jnp.pad(xf, (0, pad))
        yf = jnp.pad(yf, (0, pad))
    x2 = xf.reshape(rows, _LANE)
    y2 = yf.reshape(rows, _LANE)

    # Tile sizing: large lane-dense blocks in the native dtype (cast in-kernel).
    rows_target = max(sub, (int(block_bytes) // (_LANE * itemsize)) // sub * sub)
    rows_per_split = pl.cdiv(rows, num_splits)
    block_rows = min(rows_target, _round_up(rows_per_split, sub))
    if block_rows >= rows:
        block_rows = rows          # a full-dim block is always layout-legal

    blocks_total = pl.cdiv(rows, block_rows)
    num_splits = max(1, min(num_splits, blocks_total))
    blocks_per_split = pl.cdiv(blocks_total, num_splits)
    nominal_blocks = num_splits * blocks_per_split
    ragged = (rem != 0) or (nominal_blocks * block_rows != full_rows)

    # Wider resident accumulator: up to 4 independent (8,128) chains per split.
    for cand in (32, 16, 8):
        if block_rows % cand == 0:
            acc_rows = cand
            break
    else:
        acc_rows = block_rows

    if nominal_blocks == blocks_total:
        in_map = lambda c, i: (c * blocks_per_split + i, 0)
    else:
        # Clamp nominally out-of-range blocks onto the last real block; their
        # contribution is fully masked out in the kernel.
        max_block = blocks_total - 1
        in_map = lambda c, i: (jnp.minimum(c * blocks_per_split + i, max_block), 0)

    kernel = functools.partial(
        _charbonnier_kernel, eps=eps, blocks_per_split=blocks_per_split,
        full_rows=full_rows, rem=rem, ragged=ragged)

    # 2 inputs x double-buffered, plus headroom; explicit so big tiles never hit
    # the default scoped-VMEM limit (16 MiB on v5e), capped well under v7x's 64 MiB.
    in_bytes = 2 * 2 * block_rows * _LANE * itemsize
    vmem_limit = int(min(48 << 20, max(32 << 20, in_bytes + (8 << 20))))

    partials = pl.pallas_call(
        kernel,
        out_shape=jax.ShapeDtypeStruct((num_splits, acc_rows, _LANE), jnp.float32),
        grid_spec=pl.GridSpec(
            grid=(num_splits, blocks_per_split),
            in_specs=[
                pl.BlockSpec((block_rows, _LANE), in_map),
                pl.BlockSpec((block_rows, _LANE), in_map),
            ],
            # Same block across the reduction axis -> resident accumulator;
            # one block per parallel slice (megacore on 2-TC chips).
            out_specs=pl.BlockSpec((None, acc_rows, _LANE), lambda c, i: (c, 0, 0)),
        ),
        compiler_params=pltpu.CompilerParams(
            dimension_semantics=("parallel", "arbitrary"),
            vmem_limit_bytes=vmem_limit),
    )(x2, y2)

    # PyTorch returns a 0-d scalar tensor (sum reduction).
    return jnp.sum(partials)


def _reference_loss(x, y, eps=1e-6):
    diff = x.astype(jnp.float32) - y.astype(jnp.float32)
    return jnp.sum(jnp.sqrt(diff * diff + jnp.float32(eps)))


def _check(name, X, Y, **kwargs):
    loss = jax.block_until_ready(l1_charbonnier_loss(X, Y, **kwargs))
    ref = _reference_loss(X, Y)
    assert jnp.allclose(loss, ref, rtol=2e-5, atol=1e-2), (name, loss, ref)


if __name__ == "__main__":
    key = jax.random.PRNGKey(0)
    k1, k2, k3, k4, k5, k6, k7, k8, k9, k10 = jax.random.split(key, 10)

    # 1) NCHW inputs like the PyTorch module would see (aligned, single block).
    X = jax.random.normal(k1, (2, 4, 16, 16), dtype=jnp.float32)
    Y = jax.random.normal(k2, (2, 4, 16, 16), dtype=jnp.float32)
    _check("base", X, Y)

    # 2) Multi-block reduction loop (small block override to exercise the grid).
    X2 = jax.random.normal(k3, (2, 8, 64, 64), dtype=jnp.float32)
    Y2 = jax.random.normal(k4, (2, 8, 64, 64), dtype=jnp.float32)
    _check("multiblock", X2, Y2, block_bytes=64 * 1024)

    # 3) Ragged tail: n % 128 != 0, exercises the in-kernel element mask.
    X3 = jax.random.normal(k5, (3, 5, 7, 11), dtype=jnp.float32)
    Y3 = jax.random.normal(k6, (3, 5, 7, 11), dtype=jnp.float32)
    _check("ragged", X3, Y3)

    # 4) Uneven split: forces clamped out-of-range nominal block + row masking.
    X4 = jax.random.normal(k7, (1, 1, 300, 128), dtype=jnp.float32)
    Y4 = jax.random.normal(k8, (1, 1, 300, 128), dtype=jnp.float32)
    _check("split_clamp", X4, Y4, block_bytes=64 * 1024, num_splits=2)

    # 5) Narrow dtype kept native in HBM, cast to f32 in-kernel.
    X5 = jax.random.normal(k9, (2, 4, 32, 32), dtype=jnp.bfloat16)
    Y5 = jax.random.normal(k10, (2, 4, 32, 32), dtype=jnp.bfloat16)
    _check("bf16", X5, Y5)

    print("KERNEL_OK")
</pallas_src>

<mosaic_0001>
module attributes {stable_mosaic.version = 11 : i64} {
  func.func @_charbonnier_kernel(%arg0: i32, %arg1: i32, %arg2: memref<8x128xf32, #tpu.memory_space<vmem>>, %arg3: memref<8x128xf32, #tpu.memory_space<vmem>>, %arg4: memref<1x8x128xf32, #tpu.memory_space<vmem>>) attributes {dimension_semantics = [#tpu.dimension_semantics<parallel>, #tpu.dimension_semantics<arbitrary>], iteration_bounds = array<i64: 2, 1>, scalar_prefetch = 0 : i64, scratch_operands = 0 : i64, tpu.core_type = #tpu.core_type<tc>, window_params = [{transform_indices = @transform_0, window_bounds = array<i64: 8, 128>}, {transform_indices = @transform_1, window_bounds = array<i64: 8, 128>}, {transform_indices = @transform_2, window_bounds = array<i64: 1, 8, 128>}]} {
    %c0_i32 = arith.constant 0 : i32
    %0 = arith.cmpi eq, %arg1, %c0_i32 : i32
    %1 = arith.extui %0 : i1 to i32
    %c0_i32_0 = arith.constant 0 : i32
    %2 = arith.cmpi ne, %1, %c0_i32_0 : i32
    scf.if %2 {
      %cst_11 = arith.constant 0.000000e+00 : f32
      %18 = vector.broadcast %cst_11 : f32 to vector<8x128xf32>
      %c0_12 = arith.constant 0 : index
      %c0_13 = arith.constant 0 : index
      %c0_14 = arith.constant 0 : index
      %19 = vector.load %arg4[%c0_12, %c0_13, %c0_14] : memref<1x8x128xf32, #tpu.memory_space<vmem>>, vector<1x8x128xf32>
      %20 = vector.shape_cast %19 : vector<1x8x128xf32> to vector<8x128xf32>
      %21 = vector.shape_cast %18 : vector<8x128xf32> to vector<1x8x128xf32>
      tpu.vector_store %arg4[%c0_12, %c0_13, %c0_14], %21 {strides = array<i32>} : memref<1x8x128xf32, #tpu.memory_space<vmem>>, vector<1x8x128xf32>,
    } else {
    }
    %c0 = arith.constant 0 : index
    %c0_1 = arith.constant 0 : index
    %3 = vector.load %arg2[%c0, %c0_1] : memref<8x128xf32, #tpu.memory_space<vmem>>, vector<8x128xf32>
    %c0_2 = arith.constant 0 : index
    %c0_3 = arith.constant 0 : index
    %4 = vector.load %arg3[%c0_2, %c0_3] : memref<8x128xf32, #tpu.memory_space<vmem>>, vector<8x128xf32>
    %5 = arith.subf %3, %4 : vector<8x128xf32>
    %6 = arith.mulf %5, %5 : vector<8x128xf32>
    %cst = arith.constant 9.99999997E-7 : f32
    %7 = vector.broadcast %cst : f32 to vector<8x128xf32>
    %8 = arith.addf %6, %7 : vector<8x128xf32>
    %9 = math.sqrt %8 : vector<8x128xf32>
    %c0_4 = arith.constant 0 : index
    %c0_5 = arith.constant 0 : index
    %c0_6 = arith.constant 0 : index
    %10 = vector.load %arg4[%c0_4, %c0_5, %c0_6] : memref<1x8x128xf32, #tpu.memory_space<vmem>>, vector<1x8x128xf32>
    %11 = vector.shape_cast %10 : vector<1x8x128xf32> to vector<8x128xf32>
    %12 = vector.shape_cast %9 : vector<8x128xf32> to vector<1x8x128xf32>
    %cst_7 = arith.constant dense<0.000000e+00> : vector<8x128xf32>
    %13 = vector.multi_reduction <add>, %12, %cst_7 [0] : vector<1x8x128xf32> to vector<8x128xf32>
    %14 = arith.addf %11, %13 : vector<8x128xf32>
    %c0_8 = arith.constant 0 : index
    %c0_9 = arith.constant 0 : index
    %c0_10 = arith.constant 0 : index
    %15 = vector.load %arg4[%c0_8, %c0_9, %c0_10] : memref<1x8x128xf32, #tpu.memory_space<vmem>>, vector<1x8x128xf32>
    %16 = vector.shape_cast %15 : vector<1x8x128xf32> to vector<8x128xf32>
    %17 = vector.shape_cast %14 : vector<8x128xf32> to vector<1x8x128xf32>
    tpu.vector_store %arg4[%c0_8, %c0_9, %c0_10], %17 {strides = array<i32>} : memref<1x8x128xf32, #tpu.memory_space<vmem>>, vector<1x8x128xf32>,
    return
  }
  func.func @transform_0(%arg0: i32, %arg1: i32) -> (i32, i32) {
    %c1_i32 = arith.constant 1 : i32
    %0 = arith.muli %arg0, %c1_i32 : i32
    %1 = arith.addi %0, %arg1 : i32
    %c0_i32 = arith.constant 0 : i32
    %c0_i32_0 = arith.constant 0 : i32
    return %1, %c0_i32 : i32, i32
  }
  func.func @transform_1(%arg0: i32, %arg1: i32) -> (i32, i32) {
    %c1_i32 = arith.constant 1 : i32
    %0 = arith.muli %arg0, %c1_i32 : i32
    %1 = arith.addi %0, %arg1 : i32
    %c0_i32 = arith.constant 0 : i32
    %c0_i32_0 = arith.constant 0 : i32
    return %1, %c0_i32 : i32, i32
  }
  func.func @transform_2(%arg0: i32, %arg1: i32) -> (i32, i32, i32) {
    %c0_i32 = arith.constant 0 : i32
    %c0_i32_0 = arith.constant 0 : i32
    %c0_i32_1 = arith.constant 0 : i32
    return %arg0, %c0_i32, %c0_i32_0 : i32, i32, i32
  }
}

</mosaic_0001>

<llo_original>
// kernel: tpu_custom_call.1
$region0: #{tpu_custom_call.1}
  #allocation0 [shape = 'u32[]', space=smem, size = 0x4, offset = 0x4, fixed_abs, tag = 'smem constant byte address 0x4 - core index']
  #allocation1 [shape = 'u32[144,128]{1,0:T(1,128)}', space=vmem, size = 0x12000, scoped, tag = 'internal scratch']
  %s0 = inlined_call_operand.hbm [shape: f32[16,128], index: 0, kind: input, shape index: {}]
  %s1 = inlined_call_operand.hbm [shape: f32[16,128], index: 1, kind: input, shape index: {}]
  %s2 = inlined_call_operand.hbm [shape: f32[2,8,128], index: 2, kind: output, shape index: {}]
  %s3 = sld [smem:[#allocation0]]
  $region53: #{tpu_custom_call.1} parent=0
    _
  %s5 = ssub.s32 1, %s3
  %s6 = scalar_select 0, %s5, %s3
  $region1: #{tpu_custom_call.1} parent=0
    #allocation2 [shape = 'u8[8192]{0}', space=vmem, size = 0x2000, scoped, tag = 'input window, operand 0']
    #allocation3 [shape = 's32[2]{0}', space=sflag, size = 0x8, scoped, tag = 'scoped memory for tpu_custom_call.1']
    #allocation4 [shape = 's32[2]{0}', space=sflag, size = 0x8, scoped, tag = 'scoped memory for tpu_custom_call.1']
    #allocation5 [shape = 'u8[8192]{0}', space=vmem, size = 0x2000, scoped, tag = 'input window, operand 1']
    #allocation6 [shape = 's32[2]{0}', space=sflag, size = 0x8, scoped, tag = 'scoped memory for tpu_custom_call.1']
    #allocation7 [shape = 'u8[8192]{0}', space=vmem, size = 0x2000, scoped, tag = 'output window, operand 0']
    %7 = vsyncpa [#allocation3], 0
    %s8 = scalar_lea.sflag [#allocation3], 1
    %9 = vsyncpa %s8, 0
    %10 = vsyncpa [#allocation6], 0
    %s11 = scalar_lea.sflag [#allocation6], 1
    %12 = vsyncpa %s11, 0
    %13 = vsyncpa [#allocation4], 0
    %s14 = scalar_lea.sflag [#allocation4], 1
    %15 = vsyncpa %s14, 0
    loop: start=0, step=1, limit=4
    $region2: #{tpu_custom_call.1} parent=1 // loop_pre_header
      _
    $region3: #{tpu_custom_call.1} parent=1 // loop_header
      %s17 = sphi 0, %s21
      %p18 = scmp.ge.s32.totalorder %s17, 4
      %s24 = sphi 0, %s36
      %s25 = sphi 0, %s32
      %s26 = sphi 0, %s24
      %s27 = sphi 0, %s25
      %s28 = sphi 0, %s26
      %s29 = sphi 0, %s27
      %s41 = sphi 0, %s43
      %s44 = sphi 0, %s41
      %s45 = sphi 0, %s44
      %s61 = sphi 0, %s45
      %s69 = sphi 0, %s71
      %s72 = sphi 0, %s69
      %s73 = sphi 0, %s72
      %s89 = sphi 0, %s73
      %s95 = sphi 0, %s97
      %s98 = sphi 0, %s95
      %s99 = sphi 0, %s98
      %s115 = sphi 0, %s99
    $region4: #{tpu_custom_call.1} parent=1 // loop_header_branch
      %20 = sbr.rel (%p18) target = $region8
    $region5: #{tpu_custom_call.1} parent=1 // loop_body
      %s22 = ssub.s32 %s17, 1
      %s23 = ssub.s32 %s17, 2
      %s30 = sadd.s32 1, %s25
      %p31 = scmp.ge.s32.totalorder %s30, 1
      %s32 = scalar_select %p31, 0, %s30
      %s33 = sadd.s32 1, %s24
      %s34 = scalar_select %p31, %s33, %s24
      %p35 = scmp.ge.s32.totalorder %s34, 2
      %s36 = scalar_select %p35, 0, %s34
      %s37 = sadd.s32 %s24, %s25
      %s38 = sadd.s32 %s36, %s32
      %s39 = ssub.s32 %s37, %s38
      %p40 = scmp.eq.s32.totalorder %s39, 0
      %s42 = sadd.s32 %s41, 1
      %s43 = scalar_select %p40, %s41, %s42
      %p46 = pneg %p40
      %p47 = scmp.eq.s32.totalorder %s17, 1
      %p48 = por %p46, %p47
      %p49 = scmp.ne.s32.totalorder %s41, %s44
      %p50 = scmp.eq.s32.totalorder %s17, 0
      %p51 = por %p49, %p50
      %p52 = scmp.ne.s32.totalorder %s41, %s44
      %p53 = scmp.eq.s32.totalorder %s22, 1
      %p54 = por %p52, %p53
      %p55 = scmp.ne.s32.totalorder %s44, %s45
      %p56 = scmp.eq.s32.totalorder %s22, 0
      %p57 = por %p55, %p56
      %p58 = scmp.ne.s32.totalorder %s44, %s45
      %p59 = scmp.eq.s32.totalorder %s23, 1
      %p60 = por %p58, %p59
      %p62 = scmp.ne.s32.totalorder %s45, %s61
      %p63 = scmp.eq.s32.totalorder %s23, 0
      %p64 = por %p62, %p63
      %s65 = sadd.s32 %s24, %s25
      %s66 = sadd.s32 %s36, %s32
      %s67 = ssub.s32 %s65, %s66
      %p68 = scmp.eq.s32.totalorder %s67, 0
      %s70 = sadd.s32 %s69, 1
      %s71 = scalar_select %p68, %s69, %s70
      %p74 = pneg %p68
      %p75 = scmp.eq.s32.totalorder %s17, 1
      %p76 = por %p74, %p75
      %p77 = scmp.ne.s32.totalorder %s69, %s72
      %p78 = scmp.eq.s32.totalorder %s17, 0
      %p79 = por %p77, %p78
      %p80 = scmp.ne.s32.totalorder %s69, %s72
      %p81 = scmp.eq.s32.totalorder %s22, 1
      %p82 = por %p80, %p81
      %p83 = scmp.ne.s32.totalorder %s72, %s73
      %p84 = scmp.eq.s32.totalorder %s22, 0
      %p85 = por %p83, %p84
      %p86 = scmp.ne.s32.totalorder %s72, %s73
      %p87 = scmp.eq.s32.totalorder %s23, 1
      %p88 = por %p86, %p87
      %p90 = scmp.ne.s32.totalorder %s73, %s89
      %p91 = scmp.eq.s32.totalorder %s23, 0
      %p92 = por %p90, %p91
      %s93 = ssub.s32 %s24, %s36
      %p94 = scmp.eq.s32.totalorder %s93, 0
      %s96 = sadd.s32 %s95, 1
      %s97 = scalar_select %p94, %s95, %s96
      %p100 = pneg %p94
      %p101 = scmp.eq.s32.totalorder %s17, 1
      %p102 = por %p100, %p101
      %p103 = scmp.ne.s32.totalorder %s95, %s98
      %p104 = scmp.eq.s32.totalorder %s17, 0
      %p105 = por %p103, %p104
      %p106 = scmp.ne.s32.totalorder %s95, %s98
      %p107 = scmp.eq.s32.totalorder %s22, 1
      %p108 = por %p106, %p107
      %p109 = scmp.ne.s32.totalorder %s98, %s99
      %p110 = scmp.eq.s32.totalorder %s22, 0
      %p111 = por %p109, %p110
      %p112 = scmp.ne.s32.totalorder %s98, %s99
      %p113 = scmp.eq.s32.totalorder %s23, 1
      %p114 = por %p112, %p113
      %p116 = scmp.ne.s32.totalorder %s99, %s115
      %p117 = scmp.eq.s32.totalorder %s23, 0
      %p118 = por %p116, %p117
      %p119 = scmp.le.s32.totalorder 1, %s17
      %p120 = scmp.lt.s32.totalorder %s17, 3
      %p121 = pnand %p119, %p120
      %p122 = pneg %p121
      // Predicated region
      $region9: #{tpu_custom_call.1} parent=5 // pred_check
        _
      $region10: #{tpu_custom_call.1} parent=5 // pred_check_branch
        %124 = sbr.rel (%p121) target = $region12
      $region11: #{tpu_custom_call.1} parent=5 // pred_region
        %s125 = ssub.s32 %s17, 1
      $region12: #{tpu_custom_call.1} parent=5 // pred_fallthru
        _
      %p126 = scmp.lt.s32.totalorder %s17, 2
      // Predicated region
      $region13: #{tpu_custom_call.1} parent=5 // pred_check
        %p127 = pneg %p126
      $region14: #{tpu_custom_call.1} parent=5 // pred_check_branch
        %129 = sbr.rel (%p127) target = $region16
      $region15: #{tpu_custom_call.1} parent=5 // pred_region
        // Predicated region
        $region17: #{tpu_custom_call.1} parent=15 // pred_check
          %p130 = pneg %p51
        $region18: #{tpu_custom_call.1} parent=15 // pred_check_branch
          %132 = sbr.rel (%p130) target = $region20
        $region19: #{tpu_custom_call.1} parent=15 // pred_region
          %s133 = sand.u32 %s41, 1
          %s134 = scalar_lea.sflag [#allocation3], %s133
          %s135 = sand.u32 %s41, 1
          %s136 = smul.addr %s135, 8
          %s137 = scalar_lea.vmem [#allocation2], %s136
          %s138 = sadd.s32 %s24, %s25
          %s140 = ssub.s32 128, 128
          %141 = vsyncadd %s134, %s140
          %s142 = smul.addr %s138, 128
          %s143 = scalar_lea.hbm %s0, %s142
          %s145 = sshll.u32 %s137, 4
          %s146 = int_to_ptr.vmem [resolvable:$true] %s145
          %148 = dma.hbm_to_vmem [thread:$0]  %s143, 128, %s146, %s134
        $region20: #{tpu_custom_call.1} parent=15 // pred_fallthru
          _
        // Predicated region
        $region21: #{tpu_custom_call.1} parent=15 // pred_check
          %p149 = pneg %p79
        $region22: #{tpu_custom_call.1} parent=15 // pred_check_branch
          %151 = sbr.rel (%p149) target = $region24
        $region23: #{tpu_custom_call.1} parent=15 // pred_region
          %s152 = sand.u32 %s69, 1
          %s153 = scalar_lea.sflag [#allocation6], %s152
          %s154 = sand.u32 %s69, 1
          %s155 = smul.addr %s154, 8
          %s156 = scalar_lea.vmem [#allocation5], %s155
          %s157 = sadd.s32 %s24, %s25
          %s159 = ssub.s32 128, 128
          %160 = vsyncadd %s153, %s159
          %s161 = smul.addr %s157, 128
          %s162 = scalar_lea.hbm %s1, %s161
          %s164 = sshll.u32 %s156, 4
          %s165 = int_to_ptr.vmem [resolvable:$true] %s164
          %167 = dma.hbm_to_vmem [thread:$0]  %s162, 128, %s165, %s153
        $region24: #{tpu_custom_call.1} parent=15 // pred_fallthru
          _
      $region16: #{tpu_custom_call.1} parent=5 // pred_fallthru
        _
      %p168 = scmp.le.s32.totalorder 1, %s17
      %p169 = scmp.lt.s32.totalorder %s17, 3
      %p170 = pnand %p168, %p169
      %p171 = pneg %p170
      // Predicated region
      $region25: #{tpu_custom_call.1} parent=5 // pred_check
        _
      $region26: #{tpu_custom_call.1} parent=5 // pred_check_branch
        %173 = sbr.rel (%p170) target = $region28
      $region27: #{tpu_custom_call.1} parent=5 // pred_region
        %s174 = ssub.s32 %s17, 1
        %s175 = sand.u32 %s44, 1
        %s176 = scalar_lea.sflag [#allocation3], %s175
        %s177 = sand.u32 %s44, 1
        %s178 = smul.addr %s177, 8
        %s179 = scalar_lea.vmem [#allocation2], %s178
        // Predicated region
        $region29: #{tpu_custom_call.1} parent=27 // pred_check
          %p180 = pneg %p57
        $region30: #{tpu_custom_call.1} parent=27 // pred_check_branch
          %182 = sbr.rel (%p180) target = $region32
        $region31: #{tpu_custom_call.1} parent=27 // pred_region
          %183 = dma.done %s176, 128
        $region32: #{tpu_custom_call.1} parent=27 // pred_fallthru
          _
        %s184 = sand.u32 %s72, 1
        %s185 = scalar_lea.sflag [#allocation6], %s184
        %s186 = sand.u32 %s72, 1
        %s187 = smul.addr %s186, 8
        %s188 = scalar_lea.vmem [#allocation5], %s187
        // Predicated region
        $region33: #{tpu_custom_call.1} parent=27 // pred_check
          %p189 = pneg %p85
        $region34: #{tpu_custom_call.1} parent=27 // pred_check_branch
          %191 = sbr.rel (%p189) target = $region36
        $region35: #{tpu_custom_call.1} parent=27 // pred_region
          %192 = dma.done %s185, 128
        $region36: #{tpu_custom_call.1} parent=27 // pred_fallthru
          _
        %s193 = sand.u32 %s44, 1
        %s194 = scalar_lea.sflag [#allocation3], %s193
        %s195 = sand.u32 %s44, 1
        %s196 = smul.addr %s195, 8
        %s197 = scalar_lea.vmem [#allocation2], %s196
        %p198 = pneg %p57
        %p199 = pneg %p54
        %s200 = sand.u32 %s72, 1
        %s201 = scalar_lea.sflag [#allocation6], %s200
        %s202 = sand.u32 %s72, 1
        %s203 = smul.addr %s202, 8
        %s204 = scalar_lea.vmem [#allocation5], %s203
        %p205 = pneg %p85
        %p206 = pneg %p82
        %p207 = pneg %p111
        %p208 = pneg %p108
        %s209 = sand.u32 %s98, 1
        %s210 = scalar_lea.sflag [#allocation4], %s209
        %s211 = sand.u32 %s98, 1
        %s212 = smul.addr %s211, 8
        %s213 = scalar_lea.vmem [#allocation7], %s212
        %s214 = sadd.s32 %s26, %s27
        %s215 = sadd.s32 %s26, %s27
        %p216 = scmp.eq.s32.totalorder %s27, 0
        // Predicated region
        $region37: #{tpu_custom_call.1} parent=27 // pred_check
          %p217 = pneg %p216
        $region38: #{tpu_custom_call.1} parent=27 // pred_check_branch
          %219 = sbr.rel (%p217) target = $region40
        $region39: #{tpu_custom_call.1} parent=27 // pred_region
          %220 = vst [vmem:[%s213] sm:$0xff] 0.0
        $region40: #{tpu_custom_call.1} parent=27 // pred_fallthru
          _
        %v221 = vld [vmem:[%s179] sm:$0xff]
        %v222 = vld [vmem:[%s188] sm:$0xff]
        %v223 = vsub.f32 %v221, %v222
        %v224 = vmul.f32 %v223, %v223
        %v225 = vadd.f32 %v224, 1e-06
        %v226 = vrsqrt.pop %v225
        %v227 = vmul.f32 %v225, %v226
        %vm228 = vcmp.eq.f32.partialorder %v225, inf
        %v229 = vsel %vm228, %v225, %v227
        %vm230 = vcmp.eq.f32.partialorder %v225, 0.0
        %v231 = vand.u32 %v225, 2147483648
        %v232 = vsel %vm230, %v231, %v229
        %v233 = vld [vmem:[%s213] sm:$0xff]
        %v234 = vadd.f32 %v232, 0.0
        %v235 = vadd.f32 %v233, %v234
        %236 = vst [vmem:[%s213] sm:$0xff] %v235
        %s237 = sand.u32 %s98, 1
        %s238 = scalar_lea.sflag [#allocation4], %s237
        %s239 = sand.u32 %s98, 1
        %s240 = smul.addr %s239, 8
        %s241 = scalar_lea.vmem [#allocation7], %s240
        // Predicated region
        $region41: #{tpu_custom_call.1} parent=27 // pred_check
          %p242 = pneg %p108
        $region42: #{tpu_custom_call.1} parent=27 // pred_check_branch
          %244 = sbr.rel (%p242) target = $region44
        $region43: #{tpu_custom_call.1} parent=27 // pred_region
          %s246 = ssub.s32 128, 128
          %247 = vsyncadd %s238, %s246
          %s248 = smul.addr %s26, 128
          %s249 = scalar_lea.hbm %s2, %s248
          %s251 = sshll.u32 %s241, 4
          %s252 = int_to_ptr.vmem [resolvable:$true] %s251
          %254 = dma.vmem_to_hbm [thread:$0]  %s252, 128, %s249, %s238
        $region44: #{tpu_custom_call.1} parent=27 // pred_fallthru
          _
      $region28: #{tpu_custom_call.1} parent=5 // pred_fallthru
        _
      %p255 = scmp.le.s32.totalorder 2, %s17
      // Predicated region
      $region45: #{tpu_custom_call.1} parent=5 // pred_check
        %p256 = pneg %p255
      $region46: #{tpu_custom_call.1} parent=5 // pred_check_branch
        %258 = sbr.rel (%p256) target = $region48
      $region47: #{tpu_custom_call.1} parent=5 // pred_region
        %s259 = ssub.s32 %s17, 2
        // Predicated region
        $region49: #{tpu_custom_call.1} parent=47 // pred_check
          %p260 = pneg %p114
        $region50: #{tpu_custom_call.1} parent=47 // pred_check_branch
          %262 = sbr.rel (%p260) target = $region52
        $region51: #{tpu_custom_call.1} parent=47 // pred_region
          %s263 = sand.u32 %s99, 1
          %s264 = scalar_lea.sflag [#allocation4], %s263
          %s265 = sand.u32 %s99, 1
          %s266 = smul.addr %s265, 8
          %s267 = scalar_lea.vmem [#allocation7], %s266
          %268 = dma.done %s264, 128
        $region52: #{tpu_custom_call.1} parent=47 // pred_fallthru
          _
      $region48: #{tpu_custom_call.1} parent=5 // pred_fallthru
        _
    $region6: #{tpu_custom_call.1} parent=1 // loop_footer
      %s21 = sadd.s32 1, %s17
    $region7: #{tpu_custom_call.1} parent=1 // loop_footer_branch
      %16 = sbr.rel target = $region3
    $region8: #{tpu_custom_call.1} parent=1 // loop_exit
      _
    %269 = vsyncpa [#allocation3], 1
    %s270 = scalar_lea.sflag [#allocation3], 1
    %271 = vsyncpa %s270, 1
    %272 = vsyncpa [#allocation6], 1
    %s273 = scalar_lea.sflag [#allocation6], 1
    %274 = vsyncpa %s273, 1
    %275 = vsyncpa [#allocation4], 1
    %s276 = scalar_lea.sflag [#allocation4], 1
    %277 = vsyncpa %s276, 1

</llo_original>
